<compile_context>
chip_gen: v6e
topology: v6e:2x2x1
jax: 0.10.0
libtpu: 0.0.40
codegen_flags: <defaults>
</compile_context>

<pallas_src>
import functools

import numpy as np
import jax
import jax.numpy as jnp
from jax.experimental import pallas as pl
from jax.experimental.pallas import tpu as pltpu

POOL_SIZES = (1, 2, 3, 6)
S_RAW = sum(s * s for s in POOL_SIZES)            # 50 pooled positions total
S_PAD = -(-S_RAW // 64) * 64                      # zero-padded to 64


# ----------------------------- constant matrices ------------------------------
def _adaptive_pool_matrix(in_size, out_size):
    """Row-stochastic (out, in) matrix reproducing torch AdaptiveAvgPool1d bins."""
    P = np.zeros((out_size, in_size), dtype=np.float32)
    for i in range(out_size):
        start = (i * in_size) // out_size
        end = -(-((i + 1) * in_size) // out_size)  # ceil
        P[i, start:end] = 1.0 / (end - start)
    return P


def _bilinear_matrix(out_size, in_size):
    """(out, in) matrix for F.upsample(mode='bilinear', align_corners=True)."""
    U = np.zeros((out_size, in_size), dtype=np.float32)
    if in_size == 1:
        U[:, 0] = 1.0
        return U
    scale = (in_size - 1) / (out_size - 1)
    for i in range(out_size):
        src = i * scale
        f = min(int(np.floor(src)), in_size - 2)
        frac = src - f
        U[i, f] = 1.0 - frac
        U[i, f + 1] = frac
    return U


def _round_up(x, m):
    return -(-x // m) * m


def _vmem_capacity_bytes():
    """Per-core VMEM capacity; conservative 64 MiB (v7x) fallback."""
    try:
        info = pltpu.get_tpu_info()
        for attr in ("vmem_capacity_bytes", "vmem_size_bytes", "vmem_bytes"):
            v = getattr(info, attr, None)
            if isinstance(v, (int, np.integer)) and int(v) > 0:
                return int(v)
    except Exception:
        pass
    return 64 * 1024 * 1024


def _pick_hw_tiling(hw, tile_cap):
    """Zero-pad HW to a multiple of 128 and pick a lane tile (multiple of 128,
    <= tile_cap) that divides the padded extent, trading <=12.5% padding for
    larger (DMA-efficient) tiles.  Never returns an untiled monolithic block."""
    tile_cap = max(128, (tile_cap // 128) * 128)
    best_t, best_pad = 128, _round_up(hw, 128)
    for t in range(tile_cap, 127, -128):
        hw_pad = _round_up(hw, t)
        if hw_pad - hw <= max(hw // 8, 0):
            best_t, best_pad = t, hw_pad
            break
    # prefer >= 2 tiles (pipelining + megacore split of the reduction)
    if best_pad == best_t and best_t >= 256 and (best_t // 2) % 128 == 0:
        best_t //= 2
    return best_pad, best_t


# ----------------------------------- kernels ----------------------------------
def pool_conv_kernel(x_ref, pT_ref, wT_ref, yh_ref, out_ref, acc_ref):
    """x passthrough + adaptive avg-pool (all scales) + BN-folded 1x1 conv."""
    c = pl.program_id(1)                       # reduction split (megacore)
    k = pl.program_id(2)                       # HW tile within the split
    n_k = pl.num_programs(2)
    thw = x_ref.shape[2]

    @pl.when(k == 0)
    def _init():
        acc_ref[...] = jnp.zeros_like(acc_ref)

    xv = x_ref[0]                              # (C, thw) f32, loaded once
    # torch.cat passthrough: stream x straight into channels [0:C] of the
    # fused output -> x is never read from HBM again.
    out_ref[0] = xv

    # pooled partial: (C, thw) @ (thw, S_PAD); P^T is resident, slice in-kernel
    start = pl.multiple_of((c * n_k + k) * thw, 128)
    acc_ref[...] += jnp.dot(xv.astype(jnp.bfloat16),
                            pT_ref[pl.ds(start, thw), :],
                            preferred_element_type=jnp.float32)

    @pl.when(k == n_k - 1)
    def _finalize():
        pooled = acc_ref[...].astype(jnp.bfloat16)          # (C, S_PAD)
        # BN-scale-folded 1x1 conv (linear -> bias/ReLU/mask deferred to k2)
        yh_ref[0, 0] = jnp.dot(wT_ref[...], pooled,
                               preferred_element_type=jnp.float32)


def upsample_concat_kernel(split, yh_ref, bias_ref, mask_ref, uT_ref,
                           io_ref, out_ref):
    """Combine split conv partials, BN bias + ReLU + per-scale mask, bilinear
    upsample of all four branches, store into channels [C:2C] of the fused
    (aliased) output buffer."""
    del io_ref  # aliased final buffer; channels [0:C] were written by kernel 1
    j = pl.program_id(1)
    thw = out_ref.shape[2]

    y = yh_ref[0, 0]
    if split > 1:
        y = y + yh_ref[0, 1]
    # bias + ReLU, then per-scale block mask (kills cross-scale leakage and
    # bias bleed into padded pooled columns) -- required for correctness.
    y = jnp.maximum(y + bias_ref[...], 0.0) * mask_ref[...]

    # bilinear upsample: (4O, S_PAD) @ (S_PAD, thw); U^T resident, sliced here
    start = pl.multiple_of(j * thw, 128)
    out_ref[0] = jnp.dot(y.astype(jnp.bfloat16),
                         uT_ref[:, pl.ds(start, thw)],
                         preferred_element_type=jnp.float32)


# ---------------------------------- wrapper ------------------------------------
@jax.jit
def pyramid_pooling(x_nchw, conv_weights, bn_gamma, bn_beta, bn_mean, bn_var,
                    eps=1e-5):
    N, C, H, W = x_nchw.shape
    if C % 8 != 0:
        raise ValueError("in_channels must be a multiple of 8")
    O = C // 4                                  # 4 * O == C
    HW = H * W

    vmem_cap = _vmem_capacity_bytes()
    tile_cap = 1024 if vmem_cap >= (96 << 20) else 512
    HW_pad, thw = _pick_hw_tiling(HW, tile_cap)
    n_hw = HW_pad // thw
    SPLIT = 2 if (n_hw % 2 == 0 and n_hw >= 2) else 1
    n_k = n_hw // SPLIT

    # pooling / upsample matrices (kron of 1-D matrices), transposed layout,
    # zero-padded to (HW_pad, S_PAD) / (S_PAD, HW_pad), bf16 for the MXU.
    P_blocks, U_blocks = [], []
    for s in POOL_SIZES:
        P_blocks.append(np.kron(_adaptive_pool_matrix(H, s),
                                _adaptive_pool_matrix(W, s)))   # (s*s, HW)
        U_blocks.append(np.kron(_bilinear_matrix(H, s),
                                _bilinear_matrix(W, s)))        # (HW, s*s)
    P_T = np.zeros((HW_pad, S_PAD), np.float32)
    P_T[:HW, :S_RAW] = np.concatenate(P_blocks, axis=0).T
    U_T = np.zeros((S_PAD, HW_pad), np.float32)
    U_T[:S_RAW, :HW] = np.concatenate(U_blocks, axis=1).T
    P_T = jnp.asarray(P_T).astype(jnp.bfloat16)
    U_T = jnp.asarray(U_T).astype(jnp.bfloat16)

    # fold BN(eval) scale into the stacked 1x1 conv weights: (4O, C) bf16
    scales = [g / jnp.sqrt(v + eps) for g, v in zip(bn_gamma, bn_var)]
    W_T = jnp.concatenate(
        [w.reshape(O, C) * s[:, None] for w, s in zip(conv_weights, scales)],
        axis=0).astype(jnp.bfloat16)                            # (4O, C)
    bias = jnp.concatenate(
        [b - m * s for b, m, s in zip(bn_beta, bn_mean, scales)]
    ).reshape(4 * O, 1).astype(jnp.float32)                     # (4O, 1)

    # per-scale block mask on the (output-channel, padded-S) plane
    mask = np.zeros((4 * O, S_PAD), np.float32)
    off = 0
    for kk, s in enumerate(POOL_SIZES):
        mask[kk * O:(kk + 1) * O, off:off + s * s] = 1.0
        off += s * s
    mask = jnp.asarray(mask)

    x_flat = x_nchw.reshape(N, C, HW)           # pure reshape, no transpose
    if HW_pad != HW:
        # padded lanes must be real zeros (they feed the pooling matmul)
        x_flat = jnp.pad(x_flat, ((0, 0), (0, 0), (0, HW_pad - HW)))

    # VMEM budgets: 2x for streamed / pipelined blocks, 1x for the scratch acc.
    # (Constants are still conservatively counted at 2x because the default
    #  pipeline double-buffers them; pipeline_mode=pl.Buffered(1) would halve
    #  that on very large C if VMEM gets tight.)
    blk1 = (2 * (C * thw * 4)                   # x tile in
            + 2 * (HW_pad * S_PAD * 2)          # P^T resident (bf16)
            + 2 * (4 * O * C * 2)               # W^T (bf16)
            + 2 * (4 * O * S_PAD * 4)           # y_half out block
            + 2 * (C * thw * 4)                 # passthrough out block
            + C * S_PAD * 4)                    # scratch accumulator
    blk2 = (2 * (SPLIT * 4 * O * S_PAD * 4)     # y_half in
            + 2 * (4 * O * 4)                   # bias
            + 2 * (4 * O * S_PAD * 4)           # mask
            + 2 * (S_PAD * HW_pad * 2)          # U^T resident (bf16)
            + 2 * (C * thw * 4))                # out tile
    ceiling = max(vmem_cap - (16 << 20), 32 << 20)
    vmem1 = int(min(max(blk1 + (4 << 20), 16 << 20), ceiling))
    vmem2 = int(min(max(blk2 + (4 << 20), 16 << 20), ceiling))

    out_struct = jax.ShapeDtypeStruct((N, 2 * C, HW_pad), jnp.float32)

    # ---- kernel 1: x passthrough + pool + conv -> (y_half, fused out[:, :C]) ----
    y_half, out_k1 = pl.pallas_call(
        pool_conv_kernel,
        out_shape=(jax.ShapeDtypeStruct((N, SPLIT, 4 * O, S_PAD), jnp.float32),
                   out_struct),
        grid_spec=pltpu.PrefetchScalarGridSpec(
            num_scalar_prefetch=0,
            grid=(N, SPLIT, n_k),
            in_specs=[
                pl.BlockSpec((1, C, thw),
                             lambda n, c, k: (n, 0, c * n_k + k)),       # x tile
                pl.BlockSpec((HW_pad, S_PAD), lambda n, c, k: (0, 0)),   # P^T (resident)
                pl.BlockSpec((4 * O, C), lambda n, c, k: (0, 0)),        # W^T (scaled)
            ],
            out_specs=[
                pl.BlockSpec((1, 1, 4 * O, S_PAD),
                             lambda n, c, k: (n, c, 0, 0)),              # conv partials
                pl.BlockSpec((1, C, thw),
                             lambda n, c, k: (n, 0, c * n_k + k)),       # out[:, :C]
            ],
            scratch_shapes=[pltpu.VMEM((C, S_PAD), jnp.float32)],
        ),
        compiler_params=pltpu.CompilerParams(
            dimension_semantics=("parallel", "parallel", "arbitrary"),
            vmem_limit_bytes=vmem1),
    )(x_flat, P_T, W_T)

    # ---- kernel 2: combine + BN/ReLU/mask + upsample -> fused out[:, C:] ----
    # The kernel-1 output buffer is passed back in (memory_space=ANY, unused in
    # the body) and aliased to the output, so x's passthrough channels are never
    # re-read or re-written: total HBM traffic ~3*|x| instead of ~4*|x|.
    out = pl.pallas_call(
        functools.partial(upsample_concat_kernel, SPLIT),
        out_shape=out_struct,
        grid_spec=pltpu.PrefetchScalarGridSpec(
            num_scalar_prefetch=0,
            grid=(N, n_hw),
            in_specs=[
                pl.BlockSpec((1, SPLIT, 4 * O, S_PAD),
                             lambda n, j: (n, 0, 0, 0)),                 # y_half
                pl.BlockSpec((4 * O, 1), lambda n, j: (0, 0)),           # BN bias
                pl.BlockSpec((4 * O, S_PAD), lambda n, j: (0, 0)),       # block mask
                pl.BlockSpec((S_PAD, HW_pad), lambda n, j: (0, 0)),      # U^T (resident)
                pl.BlockSpec(memory_space=pl.ANY),                       # aliased buffer
            ],
            out_specs=pl.BlockSpec((1, C, thw), lambda n, j: (n, 1, j)),  # out[:, C:]
        ),
        input_output_aliases={4: 0},
        compiler_params=pltpu.CompilerParams(
            dimension_semantics=("parallel", "parallel"),
            vmem_limit_bytes=vmem2),
    )(y_half, bias, mask, U_T, out_k1)

    if HW_pad != HW:
        out = out[:, :, :HW]
    # (N, 2C, HW) -> (N, 2C, H, W): pure reshape, matches torch.cat(dim=1)
    return out.reshape(N, 2 * C, H, W)


# -------------------------- pure-JAX reference (check) ------------------------
def pyramid_pooling_ref(x_nchw, conv_weights, bn_gamma, bn_beta, bn_mean, bn_var,
                        eps=1e-5):
    N, C, H, W = x_nchw.shape
    O = C // 4
    feats = [x_nchw]
    for k, s in enumerate(POOL_SIZES):
        Ph = jnp.asarray(_adaptive_pool_matrix(H, s))
        Pw = jnp.asarray(_adaptive_pool_matrix(W, s))
        pooled = jnp.einsum('ph,nchw,qw->ncpq', Ph, x_nchw, Pw,
                            precision=jax.lax.Precision.HIGHEST)
        w = conv_weights[k].reshape(O, C)
        y = jnp.einsum('oc,ncpq->nopq', w, pooled,
                       precision=jax.lax.Precision.HIGHEST)
        scale = bn_gamma[k] / jnp.sqrt(bn_var[k] + eps)
        b = bn_beta[k] - bn_mean[k] * scale
        y = jnp.maximum(y * scale[None, :, None, None] + b[None, :, None, None], 0.0)
        Uh = jnp.asarray(_bilinear_matrix(H, s))
        Uw = jnp.asarray(_bilinear_matrix(W, s))
        feats.append(jnp.einsum('Hp,nopq,Wq->noHW', Uh, y, Uw,
                                precision=jax.lax.Precision.HIGHEST))
    return jnp.concatenate(feats, axis=1)


if __name__ == "__main__":
    # (2,16,16,16): HW multiple of 128 -> 2 lane tiles, SPLIT=2 reduction.
    # (1,16,10,10): exercises the zero-padded-HW path (HW=100 -> 128), SPLIT=1.
    for (N, C, H, W) in [(2, 16, 16, 16), (1, 16, 10, 10)]:
        O = C // 4
        key = jax.random.PRNGKey(0)
        keys = jax.random.split(key, 1 + 5 * len(POOL_SIZES))
        x = jax.random.normal(keys[0], (N, C, H, W), dtype=jnp.float32)

        conv_weights, bn_gamma, bn_beta, bn_mean, bn_var = [], [], [], [], []
        for k in range(len(POOL_SIZES)):
            kw, kg, kb, km, kv = keys[1 + 5 * k: 1 + 5 * (k + 1)]
            conv_weights.append(0.2 * jax.random.normal(kw, (O, C, 1, 1), jnp.float32))
            bn_gamma.append(1.0 + 0.1 * jax.random.normal(kg, (O,), jnp.float32))
            bn_beta.append(0.1 * jax.random.normal(kb, (O,), jnp.float32))
            bn_mean.append(0.1 * jax.random.normal(km, (O,), jnp.float32))
            bn_var.append(1.0 + 0.5 * jax.random.uniform(kv, (O,), jnp.float32))

        out = pyramid_pooling(x, conv_weights, bn_gamma, bn_beta, bn_mean, bn_var)
        out = jax.block_until_ready(out)

        ref = pyramid_pooling_ref(x, conv_weights, bn_gamma, bn_beta, bn_mean, bn_var)
        np.testing.assert_allclose(np.asarray(out), np.asarray(ref),
                                   rtol=2e-2, atol=2e-2)
        assert out.shape == (N, 2 * C, H, W)
    print("KERNEL_OK")
</pallas_src>

<mosaic_0001>
module attributes {stable_mosaic.version = 11 : i64} {
  func.func @upsample_concat_kernel(%arg0: i32, %arg1: i32, %arg2: memref<1x2x16x64xf32, #tpu.memory_space<vmem>>, %arg3: memref<16x1xf32, #tpu.memory_space<vmem>>, %arg4: memref<16x64xf32, #tpu.memory_space<vmem>>, %arg5: memref<64x256xbf16, #tpu.memory_space<vmem>>, %arg6: memref<2x32x256xf32, #tpu.memory_space<any>>, %arg7: memref<1x16x128xf32, #tpu.memory_space<vmem>>) attributes {dimension_semantics = [#tpu.dimension_semantics<parallel>, #tpu.dimension_semantics<parallel>], iteration_bounds = array<i64: 2, 2>, scalar_prefetch = 0 : i64, scratch_operands = 0 : i64, tpu.core_type = #tpu.core_type<tc>, window_params = [{transform_indices = @transform_0, window_bounds = array<i64: 1, 2, 16, 64>}, {pipeline_mode = #tpu.pipeline_mode<synchronous>, transform_indices = @transform_1, window_bounds = array<i64: 16, 1>}, {pipeline_mode = #tpu.pipeline_mode<synchronous>, transform_indices = @transform_2, window_bounds = array<i64: 16, 64>}, {pipeline_mode = #tpu.pipeline_mode<synchronous>, transform_indices = @transform_3, window_bounds = array<i64: 64, 256>}, {}, {transform_indices = @transform_5, window_bounds = array<i64: 1, 16, 128>}]} {
    %c0 = arith.constant 0 : index
    %c0_0 = arith.constant 0 : index
    %c0_1 = arith.constant 0 : index
    %c0_2 = arith.constant 0 : index
    %0 = vector.load %arg2[%c0, %c0_0, %c0_1, %c0_2] : memref<1x2x16x64xf32, #tpu.memory_space<vmem>>, vector<1x1x16x64xf32>
    %1 = vector.shape_cast %0 : vector<1x1x16x64xf32> to vector<16x64xf32>
    %c0_3 = arith.constant 0 : index
    %c1 = arith.constant 1 : index
    %c0_4 = arith.constant 0 : index
    %c0_5 = arith.constant 0 : index
    %2 = vector.load %arg2[%c0_3, %c1, %c0_4, %c0_5] : memref<1x2x16x64xf32, #tpu.memory_space<vmem>>, vector<1x1x16x64xf32>
    %3 = vector.shape_cast %2 : vector<1x1x16x64xf32> to vector<16x64xf32>
    %4 = arith.addf %1, %3 : vector<16x64xf32>
    %c0_6 = arith.constant 0 : index
    %c0_7 = arith.constant 0 : index
    %5 = vector.load %arg3[%c0_6, %c0_7] : memref<16x1xf32, #tpu.memory_space<vmem>>, vector<16x1xf32>
    %6 = vector.broadcast %5 : vector<16x1xf32> to vector<16x64xf32>
    %7 = arith.addf %4, %6 : vector<16x64xf32>
    %cst = arith.constant 0.000000e+00 : f32
    %8 = vector.broadcast %cst : f32 to vector<16x64xf32>
    %9 = arith.maximumf %7, %8 : vector<16x64xf32>
    %c0_8 = arith.constant 0 : index
    %c0_9 = arith.constant 0 : index
    %10 = vector.load %arg4[%c0_8, %c0_9] : memref<16x64xf32, #tpu.memory_space<vmem>>, vector<16x64xf32>
    %11 = arith.mulf %9, %10 : vector<16x64xf32>
    %c128_i32 = arith.constant 128 : i32
    %12 = arith.muli %arg1, %c128_i32 : i32
    %13 = tpu.assume_multiple %12, 128 : i32
    %14 = arith.truncf %11 : vector<16x64xf32> to vector<16x64xbf16>
    %c0_10 = arith.constant 0 : index
    %15 = arith.index_cast %13 : i32 to index
    %16 = vector.load %arg5[%c0_10, %15] : memref<64x256xbf16, #tpu.memory_space<vmem>>, vector<64x128xbf16>
    %cst_11 = arith.constant dense<0.000000e+00> : vector<16x128xf32>
    %17 = tpu.matmul %14, %16, %cst_11 {dimension_numbers = #tpu.dot_dimension_numbers<[1], [0], [0], [1], [0, 0, 1, 1], [], []>} : vector<16x64xbf16>, vector<64x128xbf16>, vector<16x128xf32> -> vector<16x128xf32>
    %c0_12 = arith.constant 0 : index
    %c0_13 = arith.constant 0 : index
    %c0_14 = arith.constant 0 : index
    %18 = vector.load %arg7[%c0_12, %c0_13, %c0_14] : memref<1x16x128xf32, #tpu.memory_space<vmem>>, vector<1x16x128xf32>
    %19 = vector.shape_cast %18 : vector<1x16x128xf32> to vector<16x128xf32>
    %20 = vector.shape_cast %17 : vector<16x128xf32> to vector<1x16x128xf32>
    tpu.vector_store %arg7[%c0_12, %c0_13, %c0_14], %20 {strides = array<i32>} : memref<1x16x128xf32, #tpu.memory_space<vmem>>, vector<1x16x128xf32>,
    return
  }
  func.func @transform_0(%arg0: i32, %arg1: i32) -> (i32, i32, i32, i32) {
    %c0_i32 = arith.constant 0 : i32
    %c0_i32_0 = arith.constant 0 : i32
    %c0_i32_1 = arith.constant 0 : i32
    %c0_i32_2 = arith.constant 0 : i32
    return %arg0, %c0_i32, %c0_i32_0, %c0_i32_1 : i32, i32, i32, i32
  }
  func.func @transform_1(%arg0: i32, %arg1: i32) -> (i32, i32) {
    %c0_i32 = arith.constant 0 : i32
    %c0_i32_0 = arith.constant 0 : i32
    %c0_i32_1 = arith.constant 0 : i32
    return %c0_i32, %c0_i32_0 : i32, i32
  }
  func.func @transform_2(%arg0: i32, %arg1: i32) -> (i32, i32) {
    %c0_i32 = arith.constant 0 : i32
    %c0_i32_0 = arith.constant 0 : i32
    %c0_i32_1 = arith.constant 0 : i32
    return %c0_i32, %c0_i32_0 : i32, i32
  }
  func.func @transform_3(%arg0: i32, %arg1: i32) -> (i32, i32) {
    %c0_i32 = arith.constant 0 : i32
    %c0_i32_0 = arith.constant 0 : i32
    %c0_i32_1 = arith.constant 0 : i32
    return %c0_i32, %c0_i32_0 : i32, i32
  }
  func.func @transform_5(%arg0: i32, %arg1: i32) -> (i32, i32, i32) {
    %c1_i32 = arith.constant 1 : i32
    %c0_i32 = arith.constant 0 : i32
    return %arg0, %c1_i32, %arg1 : i32, i32, i32
  }
}

module attributes {stable_mosaic.version = 11 : i64} {
  func.func @pool_conv_kernel(%arg0: i32, %arg1: i32, %arg2: i32, %arg3: memref<1x16x128xf32, #tpu.memory_space<vmem>>, %arg4: memref<256x64xbf16, #tpu.memory_space<vmem>>, %arg5: memref<16x16xbf16, #tpu.memory_space<vmem>>, %arg6: memref<1x1x16x64xf32, #tpu.memory_space<vmem>>, %arg7: memref<1x16x128xf32, #tpu.memory_space<vmem>>, %arg8: memref<16x64xf32, #tpu.memory_space<vmem>>) attributes {dimension_semantics = [#tpu.dimension_semantics<parallel>, #tpu.dimension_semantics<parallel>, #tpu.dimension_semantics<arbitrary>], iteration_bounds = array<i64: 2, 2, 1>, scalar_prefetch = 0 : i64, scratch_operands = 1 : i64, tpu.core_type = #tpu.core_type<tc>, window_params = [{transform_indices = @transform_0, window_bounds = array<i64: 1, 16, 128>}, {pipeline_mode = #tpu.pipeline_mode<synchronous>, transform_indices = @transform_1, window_bounds = array<i64: 256, 64>}, {pipeline_mode = #tpu.pipeline_mode<synchronous>, transform_indices = @transform_2, window_bounds = array<i64: 16, 16>}, {transform_indices = @transform_3, window_bounds = array<i64: 1, 1, 16, 64>}, {transform_indices = @transform_4, window_bounds = array<i64: 1, 16, 128>}]} {
    %c0_i32 = arith.constant 0 : i32
    %0 = arith.cmpi eq, %arg2, %c0_i32 : i32
    %1 = arith.extui %0 : i1 to i32
    %c0_i32_0 = arith.constant 0 : i32
    %2 = arith.cmpi ne, %1, %c0_i32_0 : i32
    scf.if %2 {
      %cst_13 = arith.constant 0.000000e+00 : f32
      %22 = vector.broadcast %cst_13 : f32 to vector<16x64xf32>
      %c0_14 = arith.constant 0 : index
      %c0_15 = arith.constant 0 : index
      %23 = vector.load %arg8[%c0_14, %c0_15] : memref<16x64xf32, #tpu.memory_space<vmem>>, vector<16x64xf32>
      tpu.vector_store %arg8[%c0_14, %c0_15], %22 {strides = array<i32>} : memref<16x64xf32, #tpu.memory_space<vmem>>, vector<16x64xf32>,
    } else {
    }
    %c0 = arith.constant 0 : index
    %c0_1 = arith.constant 0 : index
    %c0_2 = arith.constant 0 : index
    %3 = vector.load %arg3[%c0, %c0_1, %c0_2] : memref<1x16x128xf32, #tpu.memory_space<vmem>>, vector<1x16x128xf32>
    %4 = vector.shape_cast %3 : vector<1x16x128xf32> to vector<16x128xf32>
    %c0_3 = arith.constant 0 : index
    %c0_4 = arith.constant 0 : index
    %c0_5 = arith.constant 0 : index
    %5 = vector.load %arg7[%c0_3, %c0_4, %c0_5] : memref<1x16x128xf32, #tpu.memory_space<vmem>>, vector<1x16x128xf32>
    %6 = vector.shape_cast %5 : vector<1x16x128xf32> to vector<16x128xf32>
    %7 = vector.shape_cast %4 : vector<16x128xf32> to vector<1x16x128xf32>
    tpu.vector_store %arg7[%c0_3, %c0_4, %c0_5], %7 {strides = array<i32>} : memref<1x16x128xf32, #tpu.memory_space<vmem>>, vector<1x16x128xf32>,
    %c1_i32 = arith.constant 1 : i32
    %8 = arith.muli %arg1, %c1_i32 : i32
    %9 = arith.addi %8, %arg2 : i32
    %c128_i32 = arith.constant 128 : i32
    %10 = arith.muli %9, %c128_i32 : i32
    %11 = tpu.assume_multiple %10, 128 : i32
    %c0_6 = arith.constant 0 : index
    %c0_7 = arith.constant 0 : index
    %12 = vector.load %arg8[%c0_6, %c0_7] : memref<16x64xf32, #tpu.memory_space<vmem>>, vector<16x64xf32>
    %13 = arith.truncf %4 : vector<16x128xf32> to vector<16x128xbf16>
    %14 = arith.index_cast %11 : i32 to index
    %c0_8 = arith.constant 0 : index
    %15 = vector.load %arg4[%14, %c0_8] : memref<256x64xbf16, #tpu.memory_space<vmem>>, vector<128x64xbf16>
    %cst = arith.constant dense<0.000000e+00> : vector<16x64xf32>
    %16 = tpu.matmul %13, %15, %cst {dimension_numbers = #tpu.dot_dimension_numbers<[1], [0], [0], [1], [0, 0, 1, 1], [], []>} : vector<16x128xbf16>, vector<128x64xbf16>, vector<16x64xf32> -> vector<16x64xf32>
    %17 = arith.addf %12, %16 : vector<16x64xf32>
    %c0_9 = arith.constant 0 : index
    %c0_10 = arith.constant 0 : index
    %18 = vector.load %arg8[%c0_9, %c0_10] : memref<16x64xf32, #tpu.memory_space<vmem>>, vector<16x64xf32>
    tpu.vector_store %arg8[%c0_9, %c0_10], %17 {strides = array<i32>} : memref<16x64xf32, #tpu.memory_space<vmem>>, vector<16x64xf32>,
    %c0_i32_11 = arith.constant 0 : i32
    %19 = arith.cmpi eq, %arg2, %c0_i32_11 : i32
    %20 = arith.extui %19 : i1 to i32
    %c0_i32_12 = arith.constant 0 : i32
    %21 = arith.cmpi ne, %20, %c0_i32_12 : i32
    scf.if %21 {
      %c0_13 = arith.constant 0 : index
      %c0_14 = arith.constant 0 : index
      %22 = vector.load %arg8[%c0_13, %c0_14] : memref<16x64xf32, #tpu.memory_space<vmem>>, vector<16x64xf32>
      %23 = arith.truncf %22 : vector<16x64xf32> to vector<16x64xbf16>
      %c0_15 = arith.constant 0 : index
      %c0_16 = arith.constant 0 : index
      %24 = vector.load %arg5[%c0_15, %c0_16] : memref<16x16xbf16, #tpu.memory_space<vmem>>, vector<16x16xbf16>
      %cst_17 = arith.constant dense<0.000000e+00> : vector<16x64xf32>
      %25 = tpu.matmul %24, %23, %cst_17 {dimension_numbers = #tpu.dot_dimension_numbers<[1], [0], [0], [1], [0, 0, 1, 1], [], []>} : vector<16x16xbf16>, vector<16x64xbf16>, vector<16x64xf32> -> vector<16x64xf32>
      %c0_18 = arith.constant 0 : index
      %c0_19 = arith.constant 0 : index
      %c0_20 = arith.constant 0 : index
      %c0_21 = arith.constant 0 : index
      %26 = vector.load %arg6[%c0_18, %c0_19, %c0_20, %c0_21] : memref<1x1x16x64xf32, #tpu.memory_space<vmem>>, vector<1x1x16x64xf32>
      %27 = vector.shape_cast %26 : vector<1x1x16x64xf32> to vector<16x64xf32>
      %28 = vector.shape_cast %25 : vector<16x64xf32> to vector<1x1x16x64xf32>
      tpu.vector_store %arg6[%c0_18, %c0_19, %c0_20, %c0_21], %28 {strides = array<i32>} : memref<1x1x16x64xf32, #tpu.memory_space<vmem>>, vector<1x1x16x64xf32>,
    } else {
    }
    return
  }
  func.func @transform_0(%arg0: i32, %arg1: i32, %arg2: i32) -> (i32, i32, i32) {
    %c1_i32 = arith.constant 1 : i32
    %0 = arith.muli %arg1, %c1_i32 : i32
    %1 = arith.addi %0, %arg2 : i32
    %c0_i32 = arith.constant 0 : i32
    %c0_i32_0 = arith.constant 0 : i32
    return %arg0, %c0_i32, %1 : i32, i32, i32
  }
  func.func @transform_1(%arg0: i32, %arg1: i32, %arg2: i32) -> (i32, i32) {
    %c0_i32 = arith.constant 0 : i32
    %c0_i32_0 = arith.constant 0 : i32
    %c0_i32_1 = arith.constant 0 : i32
    return %c0_i32, %c0_i32_0 : i32, i32
  }
  func.func @transform_2(%arg0: i32, %arg1: i32, %arg2: i32) -> (i32, i32) {
    %c0_i32 = arith.constant 0 : i32
    %c0_i32_0 = arith.constant 0 : i32
    %c0_i32_1 = arith.constant 0 : i32
    return %c0_i32, %c0_i32_0 : i32, i32
  }
  func.func @transform_3(%arg0: i32, %arg1: i32, %arg2: i32) -> (i32, i32, i32, i32) {
    %c0_i32 = arith.constant 0 : i32
    %c0_i32_0 = arith.constant 0 : i32
    %c0_i32_1 = arith.constant 0 : i32
    return %arg0, %arg1, %c0_i32, %c0_i32_0 : i32, i32, i32, i32
  }
  func.func @transform_4(%arg0: i32, %arg1: i32, %arg2: i32) -> (i32, i32, i32) {
    %c1_i32 = arith.constant 1 : i32
    %0 = arith.muli %arg1, %c1_i32 : i32
    %1 = arith.addi %0, %arg2 : i32
    %c0_i32 = arith.constant 0 : i32
    %c0_i32_0 = arith.constant 0 : i32
    return %arg0, %c0_i32, %1 : i32, i32, i32
  }
}

</mosaic_0001>

<llo_original>
// kernel: pyramid_pooling.2
$region0: #{pyramid_pooling.2}
  #allocation0 [shape = 'u32[]', space=smem, size = 0x4, offset = 0x4, fixed_abs, tag = 'smem constant byte address 0x4 - core index']
  #allocation1 [shape = 'u32[144,128]{1,0:T(1,128)}', space=vmem, size = 0x12000, scoped, tag = 'internal scratch']
  #allocation2 [shape = 'f32[16,64]{1,0:T(8,128)}', space=vmem, size = 0x2000, scoped, tag = 'scratch operand']
  %s0 = inlined_call_operand.vmem [shape: f32[2,16,256], index: 0, kind: input, shape index: {}]
  %s1 = inlined_call_operand.vmem [shape: bf16[256,64], index: 1, kind: input, shape index: {}]
  %s2 = inlined_call_operand.vmem [shape: bf16[16,16], index: 2, kind: input, shape index: {}]
  %s3 = inlined_call_operand.vmem [shape: f32[2,2,16,64], index: 3, kind: output, shape index: {0}]
  %s4 = inlined_call_operand.vmem [shape: f32[2,32,256], index: 4, kind: output, shape index: {1}]
  %5 = xla_tuple %s3, %s4
  %s6 = sld [smem:[#allocation0]]
  $region133: #{pyramid_pooling.2} parent=0
    _
  %s8 = ssub.s32 1, %s6
  %s9 = scalar_select 0, %s8, %s6
  $region1: #{pyramid_pooling.2} parent=0
    #allocation3 [shape = 'u8[16384]{0}', space=vmem, size = 0x4000, scoped, tag = 'input window, operand 0']
    #allocation4 [shape = 'u8[16384]{0}', space=vmem, size = 0x4000, scoped, tag = 'output window, operand 1']
    loop: start=0, step=1, limit=6
    $region2: #{pyramid_pooling.2} parent=1 // loop_pre_header
      _
    $region3: #{pyramid_pooling.2} parent=1 // loop_header
      %s11 = sphi 0, %s15
      %p12 = scmp.ge.s32.totalorder %s11, 6
      %s18 = sphi 0, %s37
      %s19 = sphi 0, %s33
      %s20 = sphi 0, %s29
      %s21 = sphi 0, %s18
      %s22 = sphi 0, %s19
      %s23 = sphi 0, %s20
      %s24 = sphi 0, %s21
      %s25 = sphi 0, %s22
      %s26 = sphi 0, %s23
      %s44 = sphi 0, %s46
      %s47 = sphi 0, %s44
      %s48 = sphi 0, %s47
      %s64 = sphi 0, %s48
      %s68 = sphi 0, %s68
      %s70 = sphi 0, %s68
      %s71 = sphi 0, %s70
      %s85 = sphi 0, %s71
      %s89 = sphi 0, %s89
      %s91 = sphi 0, %s89
      %s92 = sphi 0, %s91
      %s106 = sphi 0, %s92
      %s114 = sphi 0, %s116
      %s117 = sphi 0, %s114
      %s118 = sphi 0, %s117
      %s134 = sphi 0, %s118
      %s144 = sphi 0, %s146
      %s147 = sphi 0, %s144
      %s148 = sphi 0, %s147
      %s164 = sphi 0, %s148
    $region4: #{pyramid_pooling.2} parent=1 // loop_header_branch
      %14 = sbr.rel (%p12) target = $region8
    $region5: #{pyramid_pooling.2} parent=1 // loop_body
      %s16 = ssub.s32 %s11, 1
      %s17 = ssub.s32 %s11, 2
      %s27 = sadd.s32 1, %s20
      %p28 = scmp.ge.s32.totalorder %s27, 1
      %s29 = scalar_select %p28, 0, %s27
      %s30 = sadd.s32 1, %s19
      %s31 = scalar_select %p28, %s30, %s19
      %p32 = scmp.ge.s32.totalorder %s31, 2
      %s33 = scalar_select %p32, 0, %s31
      %s34 = sadd.s32 1, %s18
      %s35 = scalar_select %p32, %s34, %s18
      %p36 = scmp.ge.s32.totalorder %s35, 2
      %s37 = scalar_select %p36, 0, %s35
      %s38 = sadd.s32 %s19, %s20
      %s39 = sadd.s32 %s33, %s29
      %s40 = ssub.s32 %s18, %s37
      %s41 = ssub.s32 %s38, %s39
      %s42 = sor.u32 %s40, %s41
      %p43 = scmp.eq.s32.totalorder %s42, 0
      %s45 = sadd.s32 %s44, 1
      %s46 = scalar_select %p43, %s44, %s45
      %p49 = pneg %p43
      %p50 = scmp.eq.s32.totalorder %s11, 3
      %p51 = por %p49, %p50
      %p52 = scmp.ne.s32.totalorder %s44, %s47
      %p53 = scmp.eq.s32.totalorder %s11, 0
      %p54 = por %p52, %p53
      %p55 = scmp.ne.s32.totalorder %s44, %s47
      %p56 = scmp.eq.s32.totalorder %s16, 3
      %p57 = por %p55, %p56
      %p58 = scmp.ne.s32.totalorder %s47, %s48
      %p59 = scmp.eq.s32.totalorder %s16, 0
      %p60 = por %p58, %p59
      %p61 = scmp.ne.s32.totalorder %s47, %s48
      %p62 = scmp.eq.s32.totalorder %s17, 3
      %p63 = por %p61, %p62
      %p65 = scmp.ne.s32.totalorder %s48, %s64
      %p66 = scmp.eq.s32.totalorder %s17, 0
      %p67 = por %p65, %p66
      %s69 = sadd.s32 %s68, 1
      %p72 = scmp.eq.s32.totalorder %s11, 3
      %p73 = scmp.ne.s32.totalorder %s68, %s70
      %p74 = scmp.eq.s32.totalorder %s11, 0
      %p75 = por %p73, %p74
      %p76 = scmp.ne.s32.totalorder %s68, %s70
      %p77 = scmp.eq.s32.totalorder %s16, 3
      %p78 = por %p76, %p77
      %p79 = scmp.ne.s32.totalorder %s70, %s71
      %p80 = scmp.eq.s32.totalorder %s16, 0
      %p81 = por %p79, %p80
      %p82 = scmp.ne.s32.totalorder %s70, %s71
      %p83 = scmp.eq.s32.totalorder %s17, 3
      %p84 = por %p82, %p83
      %p86 = scmp.ne.s32.totalorder %s71, %s85
      %p87 = scmp.eq.s32.totalorder %s17, 0
      %p88 = por %p86, %p87
      %s90 = sadd.s32 %s89, 1
      %p93 = scmp.eq.s32.totalorder %s11, 3
      %p94 = scmp.ne.s32.totalorder %s89, %s91
      %p95 = scmp.eq.s32.totalorder %s11, 0
      %p96 = por %p94, %p95
      %p97 = scmp.ne.s32.totalorder %s89, %s91
      %p98 = scmp.eq.s32.totalorder %s16, 3
      %p99 = por %p97, %p98
      %p100 = scmp.ne.s32.totalorder %s91, %s92
      %p101 = scmp.eq.s32.totalorder %s16, 0
      %p102 = por %p100, %p101
      %p103 = scmp.ne.s32.totalorder %s91, %s92
      %p104 = scmp.eq.s32.totalorder %s17, 3
      %p105 = por %p103, %p104
      %p107 = scmp.ne.s32.totalorder %s92, %s106
      %p108 = scmp.eq.s32.totalorder %s17, 0
      %p109 = por %p107, %p108
      %s110 = ssub.s32 %s18, %s37
      %s111 = ssub.s32 %s19, %s33
      %s112 = sor.u32 %s110, %s111
      %p113 = scmp.eq.s32.totalorder %s112, 0
      %s115 = sadd.s32 %s114, 1
      %s116 = scalar_select %p113, %s114, %s115
      %p119 = pneg %p113
      %p120 = scmp.eq.s32.totalorder %s11, 3
      %p121 = por %p119, %p120
      %p122 = scmp.ne.s32.totalorder %s114, %s117
      %p123 = scmp.eq.s32.totalorder %s11, 0
      %p124 = por %p122, %p123
      %p125 = scmp.ne.s32.totalorder %s114, %s117
      %p126 = scmp.eq.s32.totalorder %s16, 3
      %p127 = por %p125, %p126
      %p128 = scmp.ne.s32.totalorder %s117, %s118
      %p129 = scmp.eq.s32.totalorder %s16, 0
      %p130 = por %p128, %p129
      %p131 = scmp.ne.s32.totalorder %s117, %s118
      %p132 = scmp.eq.s32.totalorder %s17, 3
      %p133 = por %p131, %p132
      %p135 = scmp.ne.s32.totalorder %s118, %s134
      %p136 = scmp.eq.s32.totalorder %s17, 0
      %p137 = por %p135, %p136
      %s138 = sadd.s32 %s19, %s20
      %s139 = sadd.s32 %s33, %s29
      %s140 = ssub.s32 %s18, %s37
      %s141 = ssub.s32 %s138, %s139
      %s142 = sor.u32 %s140, %s141
      %p143 = scmp.eq.s32.totalorder %s142, 0
      %s145 = sadd.s32 %s144, 1
      %s146 = scalar_select %p143, %s144, %s145
      %p149 = pneg %p143
      %p150 = scmp.eq.s32.totalorder %s11, 3
      %p151 = por %p149, %p150
      %p152 = scmp.ne.s32.totalorder %s144, %s147
      %p153 = scmp.eq.s32.totalorder %s11, 0
      %p154 = por %p152, %p153
      %p155 = scmp.ne.s32.totalorder %s144, %s147
      %p156 = scmp.eq.s32.totalorder %s16, 3
      %p157 = por %p155, %p156
      %p158 = scmp.ne.s32.totalorder %s147, %s148
      %p159 = scmp.eq.s32.totalorder %s16, 0
      %p160 = por %p158, %p159
      %p161 = scmp.ne.s32.totalorder %s147, %s148
      %p162 = scmp.eq.s32.totalorder %s17, 3
      %p163 = por %p161, %p162
      %p165 = scmp.ne.s32.totalorder %s148, %s164
      %p166 = scmp.eq.s32.totalorder %s17, 0
      %p167 = por %p165, %p166
      %p168 = scmp.le.s32.totalorder 1, %s11
      %p169 = scmp.lt.s32.totalorder %s11, 5
      %p170 = pnand %p168, %p169
      %p171 = pneg %p170
      // Predicated region
      $region9: #{pyramid_pooling.2} parent=5 // pred_check
        _
      $region10: #{pyramid_pooling.2} parent=5 // pred_check_branch
        %173 = sbr.rel (%p170) target = $region12
      $region11: #{pyramid_pooling.2} parent=5 // pred_region
        %s174 = ssub.s32 %s11, 1
        // Predicated region
        $region13: #{pyramid_pooling.2} parent=11 // pred_check
          %p175 = pneg %p81
        $region14: #{pyramid_pooling.2} parent=11 // pred_check_branch
          %177 = sbr.rel (%p175) target = $region16
        $region15: #{pyramid_pooling.2} parent=11 // pred_region
          _
        $region16: #{pyramid_pooling.2} parent=11 // pred_fallthru
          _
        // Predicated region
        $region17: #{pyramid_pooling.2} parent=11 // pred_check
          %p178 = pneg %p102
        $region18: #{pyramid_pooling.2} parent=11 // pred_check_branch
          %180 = sbr.rel (%p178) target = $region20
        $region19: #{pyramid_pooling.2} parent=11 // pred_region
          _
        $region20: #{pyramid_pooling.2} parent=11 // pred_fallthru
          _
      $region12: #{pyramid_pooling.2} parent=5 // pred_fallthru
        _
      %p181 = scmp.lt.s32.totalorder %s11, 4
      // Predicated region
      $region21: #{pyramid_pooling.2} parent=5 // pred_check
        %p182 = pneg %p181
      $region22: #{pyramid_pooling.2} parent=5 // pred_check_branch
        %184 = sbr.rel (%p182) target = $region24
      $region23: #{pyramid_pooling.2} parent=5 // pred_region
        // Predicated region
        $region25: #{pyramid_pooling.2} parent=23 // pred_check
          %p185 = pneg %p54
        $region26: #{pyramid_pooling.2} parent=23 // pred_check_branch
          %187 = sbr.rel (%p185) target = $region28
        $region27: #{pyramid_pooling.2} parent=23 // pred_region
          %s188 = sand.u32 %s44, 1
          %s189 = sand.u32 %s44, 1
          %s190 = smul.addr %s189, 16
          %s191 = scalar_lea.vmem [#allocation3], %s190
          %s192 = sadd.s32 %s19, %s20
          %s193 = smul.addr %s18, 4
          %s194 = sadd.s32 %s192, %s193
          %s195 = smul.addr %s194, 8
          %s196 = scalar_lea.vmem %s0, %s195
          // Predicated region
          $region29: #{pyramid_pooling.2} parent=27 // pred_check
            _
          $region30: #{pyramid_pooling.2} parent=27 // pred_check_branch
            %198 = sbr.rel (0) target = $region32
          $region31: #{pyramid_pooling.2} parent=27 // pred_region
            // Predicated region
            $region33: #{pyramid_pooling.2} parent=31 // pred_check
              _
            $region34: #{pyramid_pooling.2} parent=31 // pred_check_branch
              %200 = sbr.rel (0) target = $region36
            $region35: #{pyramid_pooling.2} parent=31 // pred_region
              // Predicated region
              $region48: #{pyramid_pooling.2} parent=35 // pred_check
                _
              $region49: #{pyramid_pooling.2} parent=35 // pred_check_branch
                %218 = sbr.rel (0) target = $region51
              $region50: #{pyramid_pooling.2} parent=35 // pred_region
                loop: start=0, step=1, limit=1
                $region52: #{pyramid_pooling.2} parent=50 // loop_pre_header
                  _
                $region53: #{pyramid_pooling.2} parent=50 // loop_header
                  %s220 = sphi 0, %s224
                  %p221 = scmp.ge.s32.totalorder %s220, 1
                  %s225 = sphi %s196, %s196
                  %s226 = sphi %s191, %s191
                $region54: #{pyramid_pooling.2} parent=50 // loop_header_branch
                  %223 = sbr.rel (%p221) target = $region58
                $region55: #{pyramid_pooling.2} parent=50 // loop_body
                  %v227 = vld [vmem:[%s225] sm:$0xff]
                  %228 = vst [vmem:[%s226] sm:$0xff] %v227
                  %v229 = vld [vmem:[%s225 + $0x10] sm:$0xff]
                  %230 = vst [vmem:[%s226 + $0x8] sm:$0xff] %v229
                $region56: #{pyramid_pooling.2} parent=50 // loop_footer
                  %s224 = sadd.s32 1, %s220
                $region57: #{pyramid_pooling.2} parent=50 // loop_footer_branch
                  %219 = sbr.rel target = $region53
                $region58: #{pyramid_pooling.2} parent=50 // loop_exit
                  _
              $region51: #{pyramid_pooling.2} parent=35 // pred_fallthru
                _
              // Predicated region
              $region59: #{pyramid_pooling.2} parent=35 // pred_check
                _
              $region60: #{pyramid_pooling.2} parent=35 // pred_check_branch
                %232 = sbr.rel target = $region62
              $region61: #{pyramid_pooling.2} parent=35 // pred_region
                _
              $region62: #{pyramid_pooling.2} parent=35 // pred_fallthru
                _
            $region36: #{pyramid_pooling.2} parent=31 // pred_fallthru
              _
            // Predicated region
            $region37: #{pyramid_pooling.2} parent=31 // pred_check
              _
            $region38: #{pyramid_pooling.2} parent=31 // pred_check_branch
              %202 = sbr.rel target = $region40
            $region39: #{pyramid_pooling.2} parent=31 // pred_region
              %s204 = ssub.s32 256, 1
              loop: start=0, step=1, limit=1
              $region41: #{pyramid_pooling.2} parent=39 // loop_pre_header
                _
              $region42: #{pyramid_pooling.2} parent=39 // loop_header
                %s206 = sphi 0, %s210
                %p207 = scmp.ge.s32.totalorder %s206, 1
                %s211 = sphi %s196, %s196
                %s212 = sphi %s191, %s191
              $region43: #{pyramid_pooling.2} parent=39 // loop_header_branch
                %209 = sbr.rel (%p207) target = $region47
              $region44: #{pyramid_pooling.2} parent=39 // loop_body
                %v213 = vld [vmem:[%s211] sm:%s204]
                %214 = vst [vmem:[%s212] sm:%s204] %v213
                %v215 = vld [vmem:[%s211 + $0x10] sm:%s204]
                %216 = vst [vmem:[%s212 + $0x8] sm:%s204] %v215
              $region45: #{pyramid_pooling.2} parent=39 // loop_footer
                %s210 = sadd.s32 1, %s206
              $region46: #{pyramid_pooling.2} parent=39 // loop_footer_branch
                %205 = sbr.rel target = $region42
              $region47: #{pyramid_pooling.2} parent=39 // loop_exit
                _
            $region40: #{pyramid_pooling.2} parent=31 // pred_fallthru
              _
          $region32: #{pyramid_pooling.2} parent=27 // pred_fallthru
            _
          %233 = vnop
        $region28: #{pyramid_pooling.2} parent=23 // pred_fallthru
          _
      $region24: #{pyramid_pooling.2} parent=5 // pred_fallthru
        _
      %p234 = scmp.le.s32.totalorder 1, %s11
      %p235 = scmp.lt.s32.totalorder %s11, 5
      %p236 = pnand %p234, %p235
      %p237 = pneg %p236
      // Predicated region
      $region63: #{pyramid_pooling.2} parent=5 // pred_check
        _
      $region64: #{pyramid_pooling.2} parent=5 // pred_check_branch
        %239 = sbr.rel (%p236) target = $region66
      $region65: #{pyramid_pooling.2} parent=5 // pred_region
        %s240 = ssub.s32 %s11, 1
        %s241 = sand.u32 %s47, 1
        %s242 = sand.u32 %s47, 1
        %s243 = smul.addr %s242, 16
        %s244 = scalar_lea.vmem [#allocation3], %s243
        // Predicated region
        $region67: #{pyramid_pooling.2} parent=65 // pred_check
          %p245 = pneg %p60
        $region68: #{pyramid_pooling.2} parent=65 // pred_check_branch
          %247 = sbr.rel (%p245) target = $region70
        $region69: #{pyramid_pooling.2} parent=65 // pred_region
          _
        $region70: #{pyramid_pooling.2} parent=65 // pred_fallthru
          _
        %s248 = sand.u32 %s47, 1
        %s249 = sand.u32 %s47, 1
        %s250 = smul.addr %s249, 16
        %s251 = scalar_lea.vmem [#allocation3], %s250
        %p252 = pneg %p60
        %p253 = pneg %p57
        %p254 = pneg %p81
        %p255 = pneg %p78
        %p256 = pneg %p102
        %p257 = pneg %p99
        %p258 = pneg %p130
        %p259 = pneg %p127
        %p260 = scmp.lt.s32.totalorder %s21, 1
        %s261 = scalar_select %p260, %s21, 1
        %p262 = scmp.lt.s32.totalorder %s22, 1
        %s263 = scalar_select %p262, %s22, 1
        %s264 = smul.addr %s263, 2
        %s265 = smul.addr %s261, 4
        %s266 = sadd.s32 %s264, %s265
        %s267 = smul.addr %s266, 8
        %s268 = scalar_lea.vmem %s3, %s267
        %p269 = pneg %p160
        %p270 = pneg %p157
        %s271 = sand.u32 %s147, 1
        %s272 = sand.u32 %s147, 1
        %s273 = smul.addr %s272, 16
        %s274 = scalar_lea.vmem [#allocation4], %s273
        %s275 = sadd.s32 %s22, %s23
        %p276 = scmp.lt.s32.totalorder %s21, 1
        %s277 = scalar_select %p276, %s21, 1
        %p278 = scmp.lt.s32.totalorder %s22, 1
        %s279 = scalar_select %p278, %s22, 1
        %s280 = smul.addr %s279, 2
        %s281 = smul.addr %s277, 4
        %s282 = sadd.s32 %s280, %s281
        %s283 = smul.addr %s282, 8
        %s284 = scalar_lea.vmem %s3, %s283
        %s285 = sadd.s32 %s22, %s23
        %p287 = scmp.eq.s32.totalorder %s23, 0
        // Predicated region
        $region71: #{pyramid_pooling.2} parent=65 // pred_check
          %p288 = pneg %p287
        $region72: #{pyramid_pooling.2} parent=65 // pred_check_branch
          %290 = sbr.rel (%p288) target = $region74
        $region73: #{pyramid_pooling.2} parent=65 // pred_region
          %vm291 = vcmask 523264
          %292 = vst.msk [vmem:[#allocation2] sm:$0xff] %vm291, 0.0
          %293 = vst.msk [vmem:[#allocation2 + $0x8] sm:$0xff] %vm291, 0.0
        $region74: #{pyramid_pooling.2} parent=65 // pred_fallthru
          _
        %v294 = vld [vmem:[%s244] sm:$0xff]
        %v295 = vld [vmem:[%s244 + $0x8] sm:$0xff]
        %296 = vst [vmem:[%s274] sm:$0xff] %v294
        %297 = vst [vmem:[%s274 + $0x8] sm:$0xff] %v295
        %s298 = sadd.s32 %s22, %s23
        %s299 = smul.u32 %s298, 128
        %v300 = vld [vmem:[#allocation2] sm:$0xff]
        %v301 = vld [vmem:[#allocation2 + $0x8] sm:$0xff]
        %v302 = vpack.c.bf16 %v295, %v294
        %s303 = sshra.s32 %s299, 3
        %s304 = sand.u32 %s299, 7
        %s305 = smul.addr %s303, 4
        %s306 = scalar_lea.vmem %s1, %s305
        %v307 = vld [vmem:[%s306] sm:$0xf]
        %v308 = vld [vmem:[%s306 + $0x4] sm:$0xf]
        %v309 = vld [vmem:[%s306 + $0x8] sm:$0xf]
        %v310 = vld [vmem:[%s306 + $0xc] sm:$0xf]
        %v311 = vld [vmem:[%s306 + $0x10] sm:$0xf]
        %v312 = vld [vmem:[%s306 + $0x14] sm:$0xf]
        %v313 = vld [vmem:[%s306 + $0x18] sm:$0xf]
        %v314 = vld [vmem:[%s306 + $0x1c] sm:$0xf]
        %v315 = vld [vmem:[%s306 + $0x20] sm:$0xf]
        %v316 = vld [vmem:[%s306 + $0x24] sm:$0xf]
        %v317 = vld [vmem:[%s306 + $0x28] sm:$0xf]
        %v318 = vld [vmem:[%s306 + $0x2c] sm:$0xf]
        %v319 = vld [vmem:[%s306 + $0x30] sm:$0xf]
        %v320 = vld [vmem:[%s306 + $0x34] sm:$0xf]
        %v321 = vld [vmem:[%s306 + $0x38] sm:$0xf]
        %v322 = vld [vmem:[%s306 + $0x3c] sm:$0xf]
        %v339 = vunpack.c.l.b16 %v307
        %v340 = vunpack.c.l.b16 %v308
        %v341 = vunpack.c.l.b16 %v309
        %v342 = vunpack.c.l.b16 %v310
        %v343 = vunpack.c.l.b16 %v311
        %v344 = vunpack.c.l.b16 %v312
        %v345 = vunpack.c.l.b16 %v313
        %v346 = vunpack.c.l.b16 %v314
        %v347 = vunpack.c.l.b16 %v315
        %v348 = vunpack.c.l.b16 %v316
        %v349 = vunpack.c.l.b16 %v317
        %v350 = vunpack.c.l.b16 %v318
        %v351 = vunpack.c.l.b16 %v319
        %v352 = vunpack.c.l.b16 %v320
        %v353 = vunpack.c.l.b16 %v321
        %v354 = vunpack.c.l.b16 %v322
        %v355 = vpack.c.b16 %v340, %v339
        %v356 = vpack.c.b16 %v342, %v341
        %v357 = vpack.c.b16 %v344, %v343
        %v358 = vpack.c.b16 %v346, %v345
        %v359 = vpack.c.b16 %v348, %v347
        %v360 = vpack.c.b16 %v350, %v349
        %v361 = vpack.c.b16 %v352, %v351
        %v362 = vpack.c.b16 %v354, %v353
        %371 = vmatprep.subr.bf16.mxu0 0
        %372 = vmatpush1.bf16.msra.mxu0 %v362
        %373 = vmatprep.subr.bf16.mxu0 0
        %374 = vmatpush1.bf16.msra.mxu0 %v361
        %375 = vmatprep.subr.bf16.mxu0 0
        %376 = vmatpush1.bf16.msra.mxu0 %v360
        %377 = vmatprep.subr.bf16.mxu0 0
        %378 = vmatpush1.bf16.msra.mxu0 %v359
        %379 = vmatprep.subr.bf16.mxu0 0
        %380 = vmatpush1.bf16.msra.mxu0 %v358
        %381 = vmatprep.subr.bf16.mxu0 0
        %382 = vmatpush1.bf16.msra.mxu0 %v357
        %383 = vmatprep.subr.bf16.mxu0 0
        %384 = vmatpush1.bf16.msra.mxu0 %v356
        %385 = vmatprep.subr.bf16.mxu0 0
        %386 = vmatpush1.bf16.msra.mxu0 %v355
        %387 = vmatprep.subr.bf16.mxu0 0
        %388 = vmatpush2.bf16.msra.mxu0 0
        %389 = vmatprep.subr.bf16.mxu0 0
        %390 = vmatpush2.bf16.msra.mxu0 0
        %391 = vmatprep.subr.bf16.mxu0 0
        %392 = vmatpush2.bf16.msra.mxu0 0
        %393 = vmatprep.subr.bf16.mxu0 0
        %394 = vmatpush2.bf16.msra.mxu0 0
        %395 = vmatprep.subr.bf16.mxu0 0
        %396 = vmatpush2.bf16.msra.mxu0 0
        %397 = vmatprep.subr.bf16.mxu0 0
        %398 = vmatpush2.bf16.msra.mxu0 0
        %399 = vmatprep.subr.bf16.mxu0 0
        %400 = vmatpush2.bf16.msra.mxu0 0
        %401 = vmatprep.subr.bf16.mxu0 0
        %402 = vmatpush2.bf16.msra.mxu0 0
        %403 = vmatprep.mubr.bf16.mxu0 0
        %404 = vmatmul.mubr.bf16.gmra.mxu0 %v302
        %v405 = vpop.f32.mrf.mxu0
        %v406 = vadd.f32 0.0, %v405
        %v407 = vpop.f32.mrf.mxu0
        %v408 = vpop.f32.mrf.mxu0
        %v409 = vadd.f32 0.0, %v408
        %v410 = vpop.f32.mrf.mxu0
        %411 = vdwg.mxu0
        %v412 = vadd.f32 %v300, %v406
        %v413 = vadd.f32 %v301, %v409
        %vm414 = vcmask 523264
        %415 = vst.msk [vmem:[#allocation2] sm:$0xff] %vm414, %v412
        %416 = vst.msk [vmem:[#allocation2 + $0x8] sm:$0xff] %vm414, %v413
        // Predicated region
        $region75: #{pyramid_pooling.2} parent=65 // pred_check
          %p417 = pneg %p287
        $region76: #{pyramid_pooling.2} parent=65 // pred_check_branch
          %419 = sbr.rel (%p417) target = $region78
        $region77: #{pyramid_pooling.2} parent=65 // pred_region
          %v420 = vld [vmem:[#allocation2] sm:$0xff]
          %v421 = vld [vmem:[#allocation2 + $0x8] sm:$0xff]
          %v422 = vpack.c.bf16 %v421, %v420
          %v423 = vld [vmem:[%s2] sm:$0xf]
          %v424 = vld [vmem:[%s2 + $0x4] sm:$0xf]
          %v427 = vunpack.c.l.b16 %v423
          %v428 = vunpack.c.l.b16 %v424
          %v429 = vpack.c.b16 %v428, %v427
          %vm430 = vcmask 130048
          %v432 = vsel %vm430, %v429, 0
          %434 = vmatprep.subr.bf16.mxu0 0
          %435 = vmatpush1.bf16.msra.mxu0 0
          %436 = vmatprep.subr.bf16.mxu0 0
          %437 = vmatpush1.bf16.msra.mxu0 0
          %438 = vmatprep.subr.bf16.mxu0 0
          %439 = vmatpush1.bf16.msra.mxu0 0
          %440 = vmatprep.subr.bf16.mxu0 0
          %441 = vmatpush1.bf16.msra.mxu0 0
          %442 = vmatprep.subr.bf16.mxu0 0
          %443 = vmatpush1.bf16.msra.mxu0 0
          %444 = vmatprep.subr.bf16.mxu0 0
          %445 = vmatpush1.bf16.msra.mxu0 0
          %446 = vmatprep.subr.bf16.mxu0 0
          %447 = vmatpush1.bf16.msra.mxu0 0
          %448 = vmatprep.subr.bf16.mxu0 0
          %449 = vmatpush1.bf16.msra.mxu0 %v422
          %450 = vmatprep.subr.bf16.mxu0 0
          %451 = vmatpush2.bf16.msra.mxu0 0
          %452 = vmatprep.subr.bf16.mxu0 0
          %453 = vmatpush2.bf16.msra.mxu0 0
          %454 = vmatprep.subr.bf16.mxu0 0
          %455 = vmatpush2.bf16.msra.mxu0 0
          %456 = vmatprep.subr.bf16.mxu0 0
          %457 = vmatpush2.bf16.msra.mxu0 0
          %458 = vmatprep.subr.bf16.mxu0 0
          %459 = vmatpush2.bf16.msra.mxu0 0
          %460 = vmatprep.subr.bf16.mxu0 0
          %461 = vmatpush2.bf16.msra.mxu0 0
          %462 = vmatprep.subr.bf16.mxu0 0
          %463 = vmatpush2.bf16.msra.mxu0 0
          %464 = vmatprep.subr.bf16.mxu0 0
          %465 = vmatpush2.bf16.msra.mxu0 0
          %466 = vmatprep.mubr.bf16.mxu0 0
          %467 = vmatmul.mubr.bf16.gmra.mxu0 %v432
          %v468 = vpop.f32.mrf.mxu0
          %v469 = vadd.f32 0.0, %v468
          %v470 = vpop.f32.mrf.mxu0
          %v471 = vpop.f32.mrf.mxu0
          %v472 = vadd.f32 0.0, %v471
          %v473 = vpop.f32.mrf.mxu0
          %474 = vdwg.mxu0
          %475 = vst.msk [vmem:[%s284] sm:$0xff] %vm414, %v469
          %476 = vst.msk [vmem:[%s284 + $0x8] sm:$0xff] %vm414, %v472
        $region78: #{pyramid_pooling.2} parent=65 // pred_fallthru
          _
        %p477 = scmp.lt.s32.totalorder %s21, 1
        %s478 = scalar_select %p477, %s21, 1
        %p479 = scmp.lt.s32.totalorder %s22, 1
        %s480 = scalar_select %p479, %s22, 1
        %s481 = smul.addr %s480, 2
        %s482 = smul.addr %s478, 4
        %s483 = sadd.s32 %s481, %s482
        %s484 = smul.addr %s483, 8
        %s485 = scalar_lea.vmem %s3, %s484
        %s486 = sand.u32 %s147, 1
        %s487 = sand.u32 %s147, 1
        %s488 = smul.addr %s487, 16
        %s489 = scalar_lea.vmem [#allocation4], %s488
        // Predicated region
        $region79: #{pyramid_pooling.2} parent=65 // pred_check
          %p490 = pneg %p127
        $region80: #{pyramid_pooling.2} parent=65 // pred_check_branch
          %492 = sbr.rel (%p490) target = $region82
        $region81: #{pyramid_pooling.2} parent=65 // pred_region
          _
        $region82: #{pyramid_pooling.2} parent=65 // pred_fallthru
          _
        // Predicated region
        $region83: #{pyramid_pooling.2} parent=65 // pred_check
          %p493 = pneg %p157
        $region84: #{pyramid_pooling.2} parent=65 // pred_check_branch
          %495 = sbr.rel (%p493) target = $region86
        $region85: #{pyramid_pooling.2} parent=65 // pred_region
          %s496 = sadd.s32 %s22, %s23
          %s497 = smul.addr %s21, 8
          %s498 = sadd.s32 %s496, %s497
          %s499 = smul.addr %s498, 8
          %s500 = scalar_lea.vmem %s4, %s499
          // Predicated region
          $region87: #{pyramid_pooling.2} parent=85 // pred_check
            _
          $region88: #{pyramid_pooling.2} parent=85 // pred_check_branch
            %502 = sbr.rel (0) target = $region90
          $region89: #{pyramid_pooling.2} parent=85 // pred_region
            // Predicated region
            $region91: #{pyramid_pooling.2} parent=89 // pred_check
              _
            $region92: #{pyramid_pooling.2} parent=89 // pred_check_branch
              %504 = sbr.rel (0) target = $region94
            $region93: #{pyramid_pooling.2} parent=89 // pred_region
              // Predicated region
              $region106: #{pyramid_pooling.2} parent=93 // pred_check
                _
              $region107: #{pyramid_pooling.2} parent=93 // pred_check_branch
                %522 = sbr.rel (0) target = $region109
              $region108: #{pyramid_pooling.2} parent=93 // pred_region
                loop: start=0, step=1, limit=1
                $region110: #{pyramid_pooling.2} parent=108 // loop_pre_header
                  _
                $region111: #{pyramid_pooling.2} parent=108 // loop_header
                  %s524 = sphi 0, %s528
                  %p525 = scmp.ge.s32.totalorder %s524, 1
                  %s529 = sphi %s489, %s489
                  %s530 = sphi %s500, %s500
                $region112: #{pyramid_pooling.2} parent=108 // loop_header_branch
                  %527 = sbr.rel (%p525) target = $region116
                $region113: #{pyramid_pooling.2} parent=108 // loop_body
                  %v531 = vld [vmem:[%s529] sm:$0xff]
                  %532 = vst [vmem:[%s530] sm:$0xff] %v531
                  %v533 = vld [vmem:[%s529 + $0x8] sm:$0xff]
                  %534 = vst [vmem:[%s530 + $0x10] sm:$0xff] %v533
                $region114: #{pyramid_pooling.2} parent=108 // loop_footer
                  %s528 = sadd.s32 1, %s524
                $region115: #{pyramid_pooling.2} parent=108 // loop_footer_branch
                  %523 = sbr.rel target = $region111
                $region116: #{pyramid_pooling.2} parent=108 // loop_exit
                  _
              $region109: #{pyramid_pooling.2} parent=93 // pred_fallthru
                _
              // Predicated region
              $region117: #{pyramid_pooling.2} parent=93 // pred_check
                _
              $region118: #{pyramid_pooling.2} parent=93 // pred_check_branch
                %536 = sbr.rel target = $region120
              $region119: #{pyramid_pooling.2} parent=93 // pred_region
                _
              $region120: #{pyramid_pooling.2} parent=93 // pred_fallthru
                _
            $region94: #{pyramid_pooling.2} parent=89 // pred_fallthru
              _
            // Predicated region
            $region95: #{pyramid_pooling.2} parent=89 // pred_check
              _
            $region96: #{pyramid_pooling.2} parent=89 // pred_check_branch
              %506 = sbr.rel target = $region98
            $region97: #{pyramid_pooling.2} parent=89 // pred_region
              %s508 = ssub.s32 256, 1
              loop: start=0, step=1, limit=1
              $region99: #{pyramid_pooling.2} parent=97 // loop_pre_header
                _
              $region100: #{pyramid_pooling.2} parent=97 // loop_header
                %s510 = sphi 0, %s514
                %p511 = scmp.ge.s32.totalorder %s510, 1
                %s515 = sphi %s489, %s489
                %s516 = sphi %s500, %s500
              $region101: #{pyramid_pooling.2} parent=97 // loop_header_branch
                %513 = sbr.rel (%p511) target = $region105
              $region102: #{pyramid_pooling.2} parent=97 // loop_body
                %v517 = vld [vmem:[%s515] sm:%s508]
                %518 = vst [vmem:[%s516] sm:%s508] %v517
                %v519 = vld [vmem:[%s515 + $0x8] sm:%s508]
                %520 = vst [vmem:[%s516 + $0x10] sm:%s508] %v519
              $region103: #{pyramid_pooling.2} parent=97 // loop_footer
                %s514 = sadd.s32 1, %s510
              $region104: #{pyramid_pooling.2} parent=97 // loop_footer_branch
                %509 = sbr.rel target = $region100
              $region105: #{pyramid_pooling.2} parent=97 // loop_exit
                _
            $region98: #{pyramid_pooling.2} parent=89 // pred_fallthru
              _
          $region90: #{pyramid_pooling.2} parent=85 // pred_fallthru
            _
          %537 = vnop
        $region86: #{pyramid_pooling.2} parent=65 // pred_fallthru
          _
      $region66: #{pyramid_pooling.2} parent=5 // pred_fallthru
        _
      %p538 = scmp.le.s32.totalorder 2, %s11
      // Predicated region
      $region121: #{pyramid_pooling.2} parent=5 // pred_check
        %p539 = pneg %p538
      $region122: #{pyramid_pooling.2} parent=5 // pred_check_branch
        %541 = sbr.rel (%p539) target = $region124
      $region123: #{pyramid_pooling.2} parent=5 // pred_region
        %s542 = ssub.s32 %s11, 2
        // Predicated region
        $region125: #{pyramid_pooling.2} parent=123 // pred_check
          %p543 = pneg %p133
        $region126: #{pyramid_pooling.2} parent=123 // pred_check_branch
          %545 = sbr.rel (%p543) target = $region128
        $region127: #{pyramid_pooling.2} parent=123 // pred_region
          %p546 = scmp.lt.s32.totalorder %s24, 1
          %s547 = scalar_select %p546, %s24, 1
          %p548 = scmp.lt.s32.totalorder %s25, 1
          %s549 = scalar_select %p548, %s25, 1
          %s550 = smul.addr %s549, 2
          %s551 = smul.addr %s547, 4
          %s552 = sadd.s32 %s550, %s551
          %s553 = smul.addr %s552, 8
          %s554 = scalar_lea.vmem %s3, %s553
        $region128: #{pyramid_pooling.2} parent=123 // pred_fallthru
          _
        // Predicated region
        $region129: #{pyramid_pooling.2} parent=123 // pred_check
          %p555 = pneg %p163
        $region130: #{pyramid_pooling.2} parent=123 // pred_check_branch
          %557 = sbr.rel (%p555) target = $region132
        $region131: #{pyramid_pooling.2} parent=123 // pred_region
          %s558 = sand.u32 %s148, 1
          %s559 = sand.u32 %s148, 1
          %s560 = smul.addr %s559, 16
          %s561 = scalar_lea.vmem [#allocation4], %s560
        $region132: #{pyramid_pooling.2} parent=123 // pred_fallthru
          _
      $region124: #{pyramid_pooling.2} parent=5 // pred_fallthru
        _
    $region6: #{pyramid_pooling.2} parent=1 // loop_footer
      %s15 = sadd.s32 1, %s11
    $region7: #{pyramid_pooling.2} parent=1 // loop_footer_branch
      %10 = sbr.rel target = $region3
    $region8: #{pyramid_pooling.2} parent=1 // loop_exit
      _

// kernel: pyramid_pooling.3
$region0: #{pyramid_pooling.3}
  #allocation0 [shape = 'u32[]', space=smem, size = 0x4, offset = 0x4, fixed_abs, tag = 'smem constant byte address 0x4 - core index']
  #allocation1 [shape = 'u32[144,128]{1,0:T(1,128)}', space=vmem, size = 0x12000, scoped, tag = 'internal scratch']
  %s0 = inlined_call_operand.vmem [shape: f32[2,2,16,64], index: 0, kind: input, shape index: {}]
  %s1 = inlined_call_operand.vmem [shape: f32[16,1], index: 1, kind: input, shape index: {}]
  %s2 = inlined_call_operand.vmem [shape: f32[16,64], index: 2, kind: input, shape index: {}]
  %s3 = inlined_call_operand.vmem [shape: bf16[64,256], index: 3, kind: input, shape index: {}]
  %s4 = inlined_call_operand.vmem [shape: f32[2,32,256], index: 4, kind: input, shape index: {}, may-alias: {4,5}]
  %s5 = inlined_call_operand.vmem [shape: f32[2,32,256], index: 5, kind: output, shape index: {}, may-alias: {4,5}]
  %s6 = sld [smem:[#allocation0]]
  $region83: #{pyramid_pooling.3} parent=0
    _
  %s8 = ssub.s32 1, %s6
  %s9 = scalar_select 0, %s8, %s6
  $region1: #{pyramid_pooling.3} parent=0
    #allocation2 [shape = 'u8[16384]{0}', space=vmem, size = 0x4000, scoped, tag = 'output window, operand 0']
    loop: start=0, step=1, limit=6
    $region2: #{pyramid_pooling.3} parent=1 // loop_pre_header
      _
    $region3: #{pyramid_pooling.3} parent=1 // loop_header
      %s11 = sphi 0, %s15
      %p12 = scmp.ge.s32.totalorder %s11, 6
      %s18 = sphi 0, %s30
      %s19 = sphi 0, %s26
      %s20 = sphi 0, %s18
      %s21 = sphi 0, %s19
      %s22 = sphi 0, %s20
      %s23 = sphi 0, %s21
      %s33 = sphi 0, %s35
      %s36 = sphi 0, %s33
      %s37 = sphi 0, %s36
      %s53 = sphi 0, %s37
      %s57 = sphi 0, %s57
      %s59 = sphi 0, %s57
      %s60 = sphi 0, %s59
      %s74 = sphi 0, %s60
      %s78 = sphi 0, %s78
      %s80 = sphi 0, %s78
      %s81 = sphi 0, %s80
      %s95 = sphi 0, %s81
      %s99 = sphi 0, %s99
      %s101 = sphi 0, %s99
      %s102 = sphi 0, %s101
      %s116 = sphi 0, %s102
      %s124 = sphi 0, %s126
      %s127 = sphi 0, %s124
      %s128 = sphi 0, %s127
      %s144 = sphi 0, %s128
    $region4: #{pyramid_pooling.3} parent=1 // loop_header_branch
      %14 = sbr.rel (%p12) target = $region8
    $region5: #{pyramid_pooling.3} parent=1 // loop_body
      %s16 = ssub.s32 %s11, 1
      %s17 = ssub.s32 %s11, 2
      %s24 = sadd.s32 1, %s19
      %p25 = scmp.ge.s32.totalorder %s24, 2
      %s26 = scalar_select %p25, 0, %s24
      %s27 = sadd.s32 1, %s18
      %s28 = scalar_select %p25, %s27, %s18
      %p29 = scmp.ge.s32.totalorder %s28, 2
      %s30 = scalar_select %p29, 0, %s28
      %s31 = ssub.s32 %s18, %s30
      %p32 = scmp.eq.s32.totalorder %s31, 0
      %s34 = sadd.s32 %s33, 1
      %s35 = scalar_select %p32, %s33, %s34
      %p38 = pneg %p32
      %p39 = scmp.eq.s32.totalorder %s11, 3
      %p40 = por %p38, %p39
      %p41 = scmp.ne.s32.totalorder %s33, %s36
      %p42 = scmp.eq.s32.totalorder %s11, 0
      %p43 = por %p41, %p42
      %p44 = scmp.ne.s32.totalorder %s33, %s36
      %p45 = scmp.eq.s32.totalorder %s16, 3
      %p46 = por %p44, %p45
      %p47 = scmp.ne.s32.totalorder %s36, %s37
      %p48 = scmp.eq.s32.totalorder %s16, 0
      %p49 = por %p47, %p48
      %p50 = scmp.ne.s32.totalorder %s36, %s37
      %p51 = scmp.eq.s32.totalorder %s17, 3
      %p52 = por %p50, %p51
      %p54 = scmp.ne.s32.totalorder %s37, %s53
      %p55 = scmp.eq.s32.totalorder %s17, 0
      %p56 = por %p54, %p55
      %s58 = sadd.s32 %s57, 1
      %p61 = scmp.eq.s32.totalorder %s11, 3
      %p62 = scmp.ne.s32.totalorder %s57, %s59
      %p63 = scmp.eq.s32.totalorder %s11, 0
      %p64 = por %p62, %p63
      %p65 = scmp.ne.s32.totalorder %s57, %s59
      %p66 = scmp.eq.s32.totalorder %s16, 3
      %p67 = por %p65, %p66
      %p68 = scmp.ne.s32.totalorder %s59, %s60
      %p69 = scmp.eq.s32.totalorder %s16, 0
      %p70 = por %p68, %p69
      %p71 = scmp.ne.s32.totalorder %s59, %s60
      %p72 = scmp.eq.s32.totalorder %s17, 3
      %p73 = por %p71, %p72
      %p75 = scmp.ne.s32.totalorder %s60, %s74
      %p76 = scmp.eq.s32.totalorder %s17, 0
      %p77 = por %p75, %p76
      %s79 = sadd.s32 %s78, 1
      %p82 = scmp.eq.s32.totalorder %s11, 3
      %p83 = scmp.ne.s32.totalorder %s78, %s80
      %p84 = scmp.eq.s32.totalorder %s11, 0
      %p85 = por %p83, %p84
      %p86 = scmp.ne.s32.totalorder %s78, %s80
      %p87 = scmp.eq.s32.totalorder %s16, 3
      %p88 = por %p86, %p87
      %p89 = scmp.ne.s32.totalorder %s80, %s81
      %p90 = scmp.eq.s32.totalorder %s16, 0
      %p91 = por %p89, %p90
      %p92 = scmp.ne.s32.totalorder %s80, %s81
      %p93 = scmp.eq.s32.totalorder %s17, 3
      %p94 = por %p92, %p93
      %p96 = scmp.ne.s32.totalorder %s81, %s95
      %p97 = scmp.eq.s32.totalorder %s17, 0
      %p98 = por %p96, %p97
      %s100 = sadd.s32 %s99, 1
      %p103 = scmp.eq.s32.totalorder %s11, 3
      %p104 = scmp.ne.s32.totalorder %s99, %s101
      %p105 = scmp.eq.s32.totalorder %s11, 0
      %p106 = por %p104, %p105
      %p107 = scmp.ne.s32.totalorder %s99, %s101
      %p108 = scmp.eq.s32.totalorder %s16, 3
      %p109 = por %p107, %p108
      %p110 = scmp.ne.s32.totalorder %s101, %s102
      %p111 = scmp.eq.s32.totalorder %s16, 0
      %p112 = por %p110, %p111
      %p113 = scmp.ne.s32.totalorder %s101, %s102
      %p114 = scmp.eq.s32.totalorder %s17, 3
      %p115 = por %p113, %p114
      %p117 = scmp.ne.s32.totalorder %s102, %s116
      %p118 = scmp.eq.s32.totalorder %s17, 0
      %p119 = por %p117, %p118
      %s120 = ssub.s32 %s18, %s30
      %s121 = ssub.s32 %s19, %s26
      %s122 = sor.u32 %s120, %s121
      %p123 = scmp.eq.s32.totalorder %s122, 0
      %s125 = sadd.s32 %s124, 1
      %s126 = scalar_select %p123, %s124, %s125
      %p129 = pneg %p123
      %p130 = scmp.eq.s32.totalorder %s11, 3
      %p131 = por %p129, %p130
      %p132 = scmp.ne.s32.totalorder %s124, %s127
      %p133 = scmp.eq.s32.totalorder %s11, 0
      %p134 = por %p132, %p133
      %p135 = scmp.ne.s32.totalorder %s124, %s127
      %p136 = scmp.eq.s32.totalorder %s16, 3
      %p137 = por %p135, %p136
      %p138 = scmp.ne.s32.totalorder %s127, %s128
      %p139 = scmp.eq.s32.totalorder %s16, 0
      %p140 = por %p138, %p139
      %p141 = scmp.ne.s32.totalorder %s127, %s128
      %p142 = scmp.eq.s32.totalorder %s17, 3
      %p143 = por %p141, %p142
      %p145 = scmp.ne.s32.totalorder %s128, %s144
      %p146 = scmp.eq.s32.totalorder %s17, 0
      %p147 = por %p145, %p146
      %p148 = scmp.le.s32.totalorder 1, %s11
      %p149 = scmp.lt.s32.totalorder %s11, 5
      %p150 = pnand %p148, %p149
      %p151 = pneg %p150
      // Predicated region
      $region9: #{pyramid_pooling.3} parent=5 // pred_check
        _
      $region10: #{pyramid_pooling.3} parent=5 // pred_check_branch
        %153 = sbr.rel (%p150) target = $region12
      $region11: #{pyramid_pooling.3} parent=5 // pred_region
        %s154 = ssub.s32 %s11, 1
        // Predicated region
        $region13: #{pyramid_pooling.3} parent=11 // pred_check
          %p155 = pneg %p70
        $region14: #{pyramid_pooling.3} parent=11 // pred_check_branch
          %157 = sbr.rel (%p155) target = $region16
        $region15: #{pyramid_pooling.3} parent=11 // pred_region
          _
        $region16: #{pyramid_pooling.3} parent=11 // pred_fallthru
          _
        // Predicated region
        $region17: #{pyramid_pooling.3} parent=11 // pred_check
          %p158 = pneg %p91
        $region18: #{pyramid_pooling.3} parent=11 // pred_check_branch
          %160 = sbr.rel (%p158) target = $region20
        $region19: #{pyramid_pooling.3} parent=11 // pred_region
          _
        $region20: #{pyramid_pooling.3} parent=11 // pred_fallthru
          _
        // Predicated region
        $region21: #{pyramid_pooling.3} parent=11 // pred_check
          %p161 = pneg %p112
        $region22: #{pyramid_pooling.3} parent=11 // pred_check_branch
          %163 = sbr.rel (%p161) target = $region24
        $region23: #{pyramid_pooling.3} parent=11 // pred_region
          _
        $region24: #{pyramid_pooling.3} parent=11 // pred_fallthru
          _
      $region12: #{pyramid_pooling.3} parent=5 // pred_fallthru
        _
      %p164 = scmp.lt.s32.totalorder %s11, 4
      // Predicated region
      $region25: #{pyramid_pooling.3} parent=5 // pred_check
        %p165 = pneg %p164
      $region26: #{pyramid_pooling.3} parent=5 // pred_check_branch
        %167 = sbr.rel (%p165) target = $region28
      $region27: #{pyramid_pooling.3} parent=5 // pred_region
        // Predicated region
        $region29: #{pyramid_pooling.3} parent=27 // pred_check
          %p168 = pneg %p43
        $region30: #{pyramid_pooling.3} parent=27 // pred_check_branch
          %170 = sbr.rel (%p168) target = $region32
        $region31: #{pyramid_pooling.3} parent=27 // pred_region
          %p171 = scmp.lt.s32.totalorder %s18, 1
          %s172 = scalar_select %p171, %s18, 1
          %s173 = smul.addr %s172, 4
          %s174 = smul.addr %s173, 8
          %s175 = scalar_lea.vmem %s0, %s174
        $region32: #{pyramid_pooling.3} parent=27 // pred_fallthru
          _
      $region28: #{pyramid_pooling.3} parent=5 // pred_fallthru
        _
      %p176 = scmp.le.s32.totalorder 1, %s11
      %p177 = scmp.lt.s32.totalorder %s11, 5
      %p178 = pnand %p176, %p177
      %p179 = pneg %p178
      // Predicated region
      $region33: #{pyramid_pooling.3} parent=5 // pred_check
        _
      $region34: #{pyramid_pooling.3} parent=5 // pred_check_branch
        %181 = sbr.rel (%p178) target = $region36
      $region35: #{pyramid_pooling.3} parent=5 // pred_region
        %s182 = ssub.s32 %s11, 1
        %p183 = scmp.lt.s32.totalorder %s20, 1
        %s184 = scalar_select %p183, %s20, 1
        %s185 = smul.addr %s184, 4
        %s186 = smul.addr %s185, 8
        %s187 = scalar_lea.vmem %s0, %s186
        %p188 = pneg %p49
        %p189 = pneg %p46
        %p190 = pneg %p70
        %p191 = pneg %p67
        %p192 = pneg %p91
        %p193 = pneg %p88
        %p194 = pneg %p112
        %p195 = pneg %p109
        %p196 = pneg %p140
        %p197 = pneg %p137
        %s198 = sand.u32 %s127, 1
        %s199 = sand.u32 %s127, 1
        %s200 = smul.addr %s199, 16
        %s201 = scalar_lea.vmem [#allocation2], %s200
        %p202 = scmp.lt.s32.totalorder %s20, 1
        %s203 = scalar_select %p202, %s20, 1
        %s204 = smul.addr %s203, 4
        %s205 = smul.addr %s204, 8
        %s206 = scalar_lea.vmem %s0, %s205
        %v208 = vld [vmem:[%s206] sm:$0xff]
        %v209 = vld [vmem:[%s206 + $0x8] sm:$0xff]
        %s210 = scalar_lea.vmem %s206, 16
        %v211 = vld [vmem:[%s210] sm:$0xff]
        %v212 = vld [vmem:[%s210 + $0x8] sm:$0xff]
        %v213 = vadd.f32 %v208, %v211
        %v214 = vadd.f32 %v209, %v212
        %v215 = vld [vmem:[%s1] sm:$0xff]
        %v216 = vld [vmem:[%s1 + $0x8] sm:$0xff]
        %218 = vset.pattern.permute.xlu0 0
        %219 = vperm.xlu0 %218, %v215
        %v220 = vpop.permute.xlu0 %219
        %223 = vset.pattern.permute.xlu0 0
        %224 = vperm.xlu0 %223, %v216
        %v225 = vpop.permute.xlu0 %224
        %v227 = vadd.f32 %v213, %v220
        %v228 = vadd.f32 %v214, %v225
        %v229 = vmax.f32 %v227, 0.0
        %v230 = vmax.f32 %v228, 0.0
        %v231 = vld [vmem:[%s2] sm:$0xff]
        %v232 = vld [vmem:[%s2 + $0x8] sm:$0xff]
        %v233 = vmul.f32 %v229, %v231
        %v234 = vmul.f32 %v230, %v232
        %s235 = smul.u32 %s21, 128
        %v236 = vpack.c.bf16 %v234, %v233
        %s237 = sshra.s32 %s235, 7
        %s238 = sand.u32 %s235, 127
        %s239 = smul.addr %s237, 4
        %s240 = scalar_lea.vmem %s3, %s239
        %v241 = vld [vmem:[%s240] sm:$0xf]
        %v242 = vld [vmem:[%s240 + $0x8] sm:$0xf]
        %v243 = vld [vmem:[%s240 + $0x10] sm:$0xf]
        %v244 = vld [vmem:[%s240 + $0x18] sm:$0xf]
        %v245 = vld [vmem:[%s240 + $0x20] sm:$0xf]
        %v246 = vld [vmem:[%s240 + $0x28] sm:$0xf]
        %v247 = vld [vmem:[%s240 + $0x30] sm:$0xf]
        %v248 = vld [vmem:[%s240 + $0x38] sm:$0xf]
        %v257 = vunpack.c.l.b16 %v241
        %v258 = vunpack.c.l.b16 %v242
        %v259 = vunpack.c.l.b16 %v243
        %v260 = vunpack.c.l.b16 %v244
        %v261 = vunpack.c.l.b16 %v245
        %v262 = vunpack.c.l.b16 %v246
        %v263 = vunpack.c.l.b16 %v247
        %v264 = vunpack.c.l.b16 %v248
        %v265 = vpack.c.b16 %v258, %v257
        %v266 = vpack.c.b16 %v260, %v259
        %v267 = vpack.c.b16 %v262, %v261
        %v268 = vpack.c.b16 %v264, %v263
        %vm273 = vcmask 523264
        %v275 = vsel %vm273, %v236, 0
        %277 = vmatprep.subr.bf16.mxu0 0
        %278 = vmatpush1.bf16.msra.mxu0 0
        %279 = vmatprep.subr.bf16.mxu0 0
        %280 = vmatpush1.bf16.msra.mxu0 0
        %281 = vmatprep.subr.bf16.mxu0 0
        %282 = vmatpush1.bf16.msra.mxu0 0
        %283 = vmatprep.subr.bf16.mxu0 0
        %284 = vmatpush1.bf16.msra.mxu0 0
        %285 = vmatprep.subr.bf16.mxu0 0
        %286 = vmatpush1.bf16.msra.mxu0 %v268
        %287 = vmatprep.subr.bf16.mxu0 0
        %288 = vmatpush1.bf16.msra.mxu0 %v267
        %289 = vmatprep.subr.bf16.mxu0 0
        %290 = vmatpush1.bf16.msra.mxu0 %v266
        %291 = vmatprep.subr.bf16.mxu0 0
        %292 = vmatpush1.bf16.msra.mxu0 %v265
        %293 = vmatprep.subr.bf16.mxu0 0
        %294 = vmatpush2.bf16.msra.mxu0 0
        %295 = vmatprep.subr.bf16.mxu0 0
        %296 = vmatpush2.bf16.msra.mxu0 0
        %297 = vmatprep.subr.bf16.mxu0 0
        %298 = vmatpush2.bf16.msra.mxu0 0
        %299 = vmatprep.subr.bf16.mxu0 0
        %300 = vmatpush2.bf16.msra.mxu0 0
        %301 = vmatprep.subr.bf16.mxu0 0
        %302 = vmatpush2.bf16.msra.mxu0 0
        %303 = vmatprep.subr.bf16.mxu0 0
        %304 = vmatpush2.bf16.msra.mxu0 0
        %305 = vmatprep.subr.bf16.mxu0 0
        %306 = vmatpush2.bf16.msra.mxu0 0
        %307 = vmatprep.subr.bf16.mxu0 0
        %308 = vmatpush2.bf16.msra.mxu0 0
        %309 = vmatprep.mubr.bf16.mxu0 0
        %310 = vmatmul.mubr.bf16.gmra.mxu0 %v275
        %v311 = vpop.f32.mrf.mxu0
        %v312 = vadd.f32 0.0, %v311
        %v313 = vpop.f32.mrf.mxu0
        %v314 = vpop.f32.mrf.mxu0
        %v315 = vadd.f32 0.0, %v314
        %v316 = vpop.f32.mrf.mxu0
        %317 = vdwg.mxu0
        %318 = vst [vmem:[%s201] sm:$0xff] %v312
        %319 = vst [vmem:[%s201 + $0x8] sm:$0xff] %v315
        %s320 = sand.u32 %s127, 1
        %s321 = sand.u32 %s127, 1
        %s322 = smul.addr %s321, 16
        %s323 = scalar_lea.vmem [#allocation2], %s322
        // Predicated region
        $region37: #{pyramid_pooling.3} parent=35 // pred_check
          %p324 = pneg %p137
        $region38: #{pyramid_pooling.3} parent=35 // pred_check_branch
          %326 = sbr.rel (%p324) target = $region40
        $region39: #{pyramid_pooling.3} parent=35 // pred_region
          %s327 = sadd.s32 %s21, 4
          %s328 = smul.addr %s20, 8
          %s329 = sadd.s32 %s327, %s328
          %s330 = smul.addr %s329, 8
          %s331 = scalar_lea.vmem %s5, %s330
          // Predicated region
          $region41: #{pyramid_pooling.3} parent=39 // pred_check
            _
          $region42: #{pyramid_pooling.3} parent=39 // pred_check_branch
            %333 = sbr.rel (0) target = $region44
          $region43: #{pyramid_pooling.3} parent=39 // pred_region
            // Predicated region
            $region45: #{pyramid_pooling.3} parent=43 // pred_check
              _
            $region46: #{pyramid_pooling.3} parent=43 // pred_check_branch
              %335 = sbr.rel (0) target = $region48
            $region47: #{pyramid_pooling.3} parent=43 // pred_region
              // Predicated region
              $region60: #{pyramid_pooling.3} parent=47 // pred_check
                _
              $region61: #{pyramid_pooling.3} parent=47 // pred_check_branch
                %353 = sbr.rel (0) target = $region63
              $region62: #{pyramid_pooling.3} parent=47 // pred_region
                loop: start=0, step=1, limit=1
                $region64: #{pyramid_pooling.3} parent=62 // loop_pre_header
                  _
                $region65: #{pyramid_pooling.3} parent=62 // loop_header
                  %s355 = sphi 0, %s359
                  %p356 = scmp.ge.s32.totalorder %s355, 1
                  %s360 = sphi %s323, %s323
                  %s361 = sphi %s331, %s331
                $region66: #{pyramid_pooling.3} parent=62 // loop_header_branch
                  %358 = sbr.rel (%p356) target = $region70
                $region67: #{pyramid_pooling.3} parent=62 // loop_body
                  %v362 = vld [vmem:[%s360] sm:$0xff]
                  %363 = vst [vmem:[%s361] sm:$0xff] %v362
                  %v364 = vld [vmem:[%s360 + $0x8] sm:$0xff]
                  %365 = vst [vmem:[%s361 + $0x10] sm:$0xff] %v364
                $region68: #{pyramid_pooling.3} parent=62 // loop_footer
                  %s359 = sadd.s32 1, %s355
                $region69: #{pyramid_pooling.3} parent=62 // loop_footer_branch
                  %354 = sbr.rel target = $region65
                $region70: #{pyramid_pooling.3} parent=62 // loop_exit
                  _
              $region63: #{pyramid_pooling.3} parent=47 // pred_fallthru
                _
              // Predicated region
              $region71: #{pyramid_pooling.3} parent=47 // pred_check
                _
              $region72: #{pyramid_pooling.3} parent=47 // pred_check_branch
                %367 = sbr.rel target = $region74
              $region73: #{pyramid_pooling.3} parent=47 // pred_region
                _
              $region74: #{pyramid_pooling.3} parent=47 // pred_fallthru
                _
            $region48: #{pyramid_pooling.3} parent=43 // pred_fallthru
              _
            // Predicated region
            $region49: #{pyramid_pooling.3} parent=43 // pred_check
              _
            $region50: #{pyramid_pooling.3} parent=43 // pred_check_branch
              %337 = sbr.rel target = $region52
            $region51: #{pyramid_pooling.3} parent=43 // pred_region
              %s339 = ssub.s32 256, 1
              loop: start=0, step=1, limit=1
              $region53: #{pyramid_pooling.3} parent=51 // loop_pre_header
                _
              $region54: #{pyramid_pooling.3} parent=51 // loop_header
                %s341 = sphi 0, %s345
                %p342 = scmp.ge.s32.totalorder %s341, 1
                %s346 = sphi %s323, %s323
                %s347 = sphi %s331, %s331
              $region55: #{pyramid_pooling.3} parent=51 // loop_header_branch
                %344 = sbr.rel (%p342) target = $region59
              $region56: #{pyramid_pooling.3} parent=51 // loop_body
                %v348 = vld [vmem:[%s346] sm:%s339]
                %349 = vst [vmem:[%s347] sm:%s339] %v348
                %v350 = vld [vmem:[%s346 + $0x8] sm:%s339]
                %351 = vst [vmem:[%s347 + $0x10] sm:%s339] %v350
              $region57: #{pyramid_pooling.3} parent=51 // loop_footer
                %s345 = sadd.s32 1, %s341
              $region58: #{pyramid_pooling.3} parent=51 // loop_footer_branch
                %340 = sbr.rel target = $region54
              $region59: #{pyramid_pooling.3} parent=51 // loop_exit
                _
            $region52: #{pyramid_pooling.3} parent=43 // pred_fallthru
              _
          $region44: #{pyramid_pooling.3} parent=39 // pred_fallthru
            _
          %368 = vnop
        $region40: #{pyramid_pooling.3} parent=35 // pred_fallthru
          _
      $region36: #{pyramid_pooling.3} parent=5 // pred_fallthru
        _
      %p369 = scmp.le.s32.totalorder 2, %s11
      // Predicated region
      $region75: #{pyramid_pooling.3} parent=5 // pred_check
        %p370 = pneg %p369
      $region76: #{pyramid_pooling.3} parent=5 // pred_check_branch
        %372 = sbr.rel (%p370) target = $region78
      $region77: #{pyramid_pooling.3} parent=5 // pred_region
        %s373 = ssub.s32 %s11, 2
        // Predicated region
        $region79: #{pyramid_pooling.3} parent=77 // pred_check
          %p374 = pneg %p143
        $region80: #{pyramid_pooling.3} parent=77 // pred_check_branch
          %376 = sbr.rel (%p374) target = $region82
        $region81: #{pyramid_pooling.3} parent=77 // pred_region
          %s377 = sand.u32 %s128, 1
          %s378 = sand.u32 %s128, 1
          %s379 = smul.addr %s378, 16
          %s380 = scalar_lea.vmem [#allocation2], %s379
        $region82: #{pyramid_pooling.3} parent=77 // pred_fallthru
          _
      $region78: #{pyramid_pooling.3} parent=5 // pred_fallthru
        _
    $region6: #{pyramid_pooling.3} parent=1 // loop_footer
      %s15 = sadd.s32 1, %s11
    $region7: #{pyramid_pooling.3} parent=1 // loop_footer_branch
      %10 = sbr.rel target = $region3
    $region8: #{pyramid_pooling.3} parent=1 // loop_exit
      _

</llo_original>
